<compile_context>
chip_gen: v7x
topology: tpu7x:2x2x1
jax: 0.10.0
libtpu: 0.0.40
codegen_flags: <defaults>
</compile_context>

<pallas_src>
import math

import jax
import jax.numpy as jnp
from jax.experimental import pallas as pl
from jax.experimental.pallas import tpu as pltpu

_HEAD_WIDTH = 128  # lane-dense output slab width (rsa lane 0, ss lanes 1..3)


def _round_up(n, m):
    return ((n + m - 1) // m) * m


def _net_kernel(x_ref,
                w1_ref, b1_ref, w2_ref, b2_ref, w3_ref, b3_ref, w4_ref, b4_ref,
                wh_ref, bh_ref,
                out_ref):
    x = x_ref[...]  # (TB, 300)

    def layer(a, w_ref, b_ref):
        z = jnp.dot(a.astype(jnp.bfloat16), w_ref[...],
                    preferred_element_type=jnp.float32) + b_ref[...]
        return jnp.maximum(z, 0.0)

    # ---- ff: 4x (Linear + ReLU); Dropout(0.1) is identity at inference.
    h = layer(x, w1_ref, b1_ref)      # (TB, 400)
    h = layer(h, w2_ref, b2_ref)      # (TB, 200)
    h = layer(h, w3_ref, b3_ref)      # (TB, 100)
    h = layer(h, w4_ref, b4_ref)      # (TB, 10)

    # ---- fused heads: one (TB,10) x (10,128) matmul; lanes 0..3 meaningful.
    zh = jnp.dot(h.astype(jnp.bfloat16), wh_ref[...],
                 preferred_element_type=jnp.float32) + bh_ref[...]  # (TB,128)

    lane = jax.lax.broadcasted_iota(jnp.int32, zh.shape, 1)
    ss_mask = (lane >= 1) & (lane < 4)

    # Softmax logits (lanes 1..3), max-shifted for stability.
    zs = jnp.where(ss_mask, zh, -jnp.inf)
    m = jnp.max(zs, axis=1, keepdims=True)

    # Single fused exp over the slab:
    #   lane 0      -> exp(-zh)        (sigmoid denominator term)
    #   lanes 1..3  -> exp(zh - m)     (softmax numerators)
    #   lanes 4..   -> exp(-inf) = 0
    e = jnp.exp(jnp.where(lane == 0, -zh, zs - m))

    # Exact f32 divisions: sigmoid handles exp overflow (1/(1+inf)=0) and
    # softmax rows sum to 1 to f32 precision.
    sig = 1.0 / (1.0 + e)                                             # lane 0
    ssum = jnp.sum(jnp.where(ss_mask, e, 0.0), axis=1, keepdims=True)
    sm = e / ssum                                                     # lanes 1..3

    out_ref[...] = jnp.where(lane == 0, sig, jnp.where(ss_mask, sm, 0.0))


def net_forward(x, prepared_params, *, batch_tile=None):
    """x: (B, 300) float32 (or bfloat16). prepared_params: prepare_params() output."""
    B = x.shape[0]
    D_in = x.shape[1]

    if batch_tile is None:
        if B <= 256:
            # Small batch: single tile rounded up to the sublane (8).
            batch_tile = _round_up(B, 8)
        else:
            # Large tiles amortize per-grid-step overhead (~0.35 us); cap so
            # the grid keeps >=4 steps (v7x 2-TC sharding of the "parallel"
            # axis) and stays comfortably inside the 32 MiB scoped-VMEM limit.
            batch_tile = max(256, min(2048, _round_up(B // 4, 256)))
    tb = batch_tile

    Bp = _round_up(B, tb)
    if Bp != B:
        x = jnp.pad(x, ((0, Bp - B), (0, 0)))

    grid = (Bp // tb,)

    in_specs = [pl.BlockSpec((tb, D_in), lambda i: (i, 0))]
    for p in prepared_params:
        # Weights/biases: full-array blocks, constant block index -> stay
        # VMEM-resident across all grid steps (DMA'd once).
        in_specs.append(pl.BlockSpec(p.shape, lambda i: (0, 0)))

    out = pl.pallas_call(
        _net_kernel,
        out_shape=jax.ShapeDtypeStruct((Bp, _HEAD_WIDTH), jnp.float32),
        grid=grid,
        in_specs=in_specs,
        out_specs=pl.BlockSpec((tb, _HEAD_WIDTH), lambda i: (i, 0)),
        compiler_params=pltpu.CompilerParams(
            dimension_semantics=("parallel",)),
    )(x, *prepared_params)

    rsa = out[:B, 0:1]
    ss = out[:B, 1:4]
    return rsa, ss


def init_params(key):
    """PyTorch-style uniform(+-1/sqrt(fan_in)) Linear init, f32.

    Weights stored transposed relative to torch: (in, out)."""
    dims = [(300, 400), (400, 200), (200, 100), (100, 10), (10, 1), (10, 3)]
    params = []
    for (fan_in, fan_out) in dims:
        key, kw, kb = jax.random.split(key, 3)
        bound = 1.0 / math.sqrt(fan_in)
        w = jax.random.uniform(kw, (fan_in, fan_out), jnp.float32, -bound, bound)
        b = jax.random.uniform(kb, (1, fan_out), jnp.float32, -bound, bound)
        params += [w, b]
    return params


def prepare_params(params):
    """Cast weights to bf16, fuse + lane-pad the two heads. Biases stay f32."""
    w1, b1, w2, b2, w3, b3, w4, b4, wr, br, ws, bs = params
    wh = jnp.concatenate([wr, ws], axis=1)                      # (10, 4)
    wh = jnp.pad(wh, ((0, 0), (0, _HEAD_WIDTH - wh.shape[1])))  # (10, 128)
    bh = jnp.concatenate([br, bs], axis=1)                      # (1, 4)
    bh = jnp.pad(bh, ((0, 0), (0, _HEAD_WIDTH - bh.shape[1])))  # (1, 128)
    bf = lambda w: w.astype(jnp.bfloat16)
    return [bf(w1), b1, bf(w2), b2, bf(w3), b3, bf(w4), b4, bf(wh), bh]


def net_reference(x, prepared_params):
    """Pure-JAX reference mirroring the kernel's bf16-weight numerics."""
    w1, b1, w2, b2, w3, b3, w4, b4, wh, bh = prepared_params

    def dot_bf16(a, w):
        return jnp.dot(a.astype(jnp.bfloat16).astype(jnp.float32),
                       w.astype(jnp.float32))

    h = jnp.maximum(dot_bf16(x, w1) + b1, 0.0)
    h = jnp.maximum(dot_bf16(h, w2) + b2, 0.0)
    h = jnp.maximum(dot_bf16(h, w3) + b3, 0.0)
    h = jnp.maximum(dot_bf16(h, w4) + b4, 0.0)
    zh = dot_bf16(h, wh) + bh
    rsa = jax.nn.sigmoid(zh[:, 0:1])
    ss = jax.nn.softmax(zh[:, 1:4], axis=1)
    return rsa, ss


if __name__ == "__main__":
    key = jax.random.PRNGKey(0)
    key, kx = jax.random.split(key)

    B = 8
    x = jax.random.normal(kx, (B, 300), dtype=jnp.float32)
    params = init_params(key)
    prepared = prepare_params(params)

    rsa, ss = net_forward(x, prepared)
    jax.block_until_ready((rsa, ss))

    rsa_ref, ss_ref = net_reference(x, prepared)
    assert rsa.shape == (B, 1) and ss.shape == (B, 3)
    # bf16 weights -> tolerance looser than pure-f32.
    assert jnp.allclose(rsa, rsa_ref, atol=1e-2, rtol=1e-2)
    assert jnp.allclose(ss, ss_ref, atol=1e-2, rtol=1e-2)
    assert jnp.allclose(jnp.sum(ss, axis=1), 1.0, atol=1e-3)

    print("KERNEL_OK")
</pallas_src>

<mosaic_0001>
module attributes {stable_mosaic.version = 11 : i64} {
  func.func @_net_kernel(%arg0: i32, %arg1: memref<8x300xf32, #tpu.memory_space<vmem>>, %arg2: memref<300x400xbf16, #tpu.memory_space<vmem>>, %arg3: memref<1x400xf32, #tpu.memory_space<vmem>>, %arg4: memref<400x200xbf16, #tpu.memory_space<vmem>>, %arg5: memref<1x200xf32, #tpu.memory_space<vmem>>, %arg6: memref<200x100xbf16, #tpu.memory_space<vmem>>, %arg7: memref<1x100xf32, #tpu.memory_space<vmem>>, %arg8: memref<100x10xbf16, #tpu.memory_space<vmem>>, %arg9: memref<1x10xf32, #tpu.memory_space<vmem>>, %arg10: memref<10x128xbf16, #tpu.memory_space<vmem>>, %arg11: memref<1x128xf32, #tpu.memory_space<vmem>>, %arg12: memref<8x128xf32, #tpu.memory_space<vmem>>) attributes {dimension_semantics = [#tpu.dimension_semantics<parallel>], iteration_bounds = array<i64: 1>, scalar_prefetch = 0 : i64, scratch_operands = 0 : i64, tpu.core_type = #tpu.core_type<tc>, window_params = [{transform_indices = @transform_0, window_bounds = array<i64: 8, 300>}, {pipeline_mode = #tpu.pipeline_mode<synchronous>, transform_indices = @transform_1, window_bounds = array<i64: 300, 400>}, {pipeline_mode = #tpu.pipeline_mode<synchronous>, transform_indices = @transform_2, window_bounds = array<i64: 1, 400>}, {pipeline_mode = #tpu.pipeline_mode<synchronous>, transform_indices = @transform_3, window_bounds = array<i64: 400, 200>}, {pipeline_mode = #tpu.pipeline_mode<synchronous>, transform_indices = @transform_4, window_bounds = array<i64: 1, 200>}, {pipeline_mode = #tpu.pipeline_mode<synchronous>, transform_indices = @transform_5, window_bounds = array<i64: 200, 100>}, {pipeline_mode = #tpu.pipeline_mode<synchronous>, transform_indices = @transform_6, window_bounds = array<i64: 1, 100>}, {pipeline_mode = #tpu.pipeline_mode<synchronous>, transform_indices = @transform_7, window_bounds = array<i64: 100, 10>}, {pipeline_mode = #tpu.pipeline_mode<synchronous>, transform_indices = @transform_8, window_bounds = array<i64: 1, 10>}, {pipeline_mode = #tpu.pipeline_mode<synchronous>, transform_indices = @transform_9, window_bounds = array<i64: 10, 128>}, {pipeline_mode = #tpu.pipeline_mode<synchronous>, transform_indices = @transform_10, window_bounds = array<i64: 1, 128>}, {transform_indices = @transform_11, window_bounds = array<i64: 8, 128>}]} {
    %c0 = arith.constant 0 : index
    %c0_0 = arith.constant 0 : index
    %0 = vector.load %arg1[%c0, %c0_0] : memref<8x300xf32, #tpu.memory_space<vmem>>, vector<8x300xf32>
    %1 = arith.truncf %0 : vector<8x300xf32> to vector<8x300xbf16>
    %c0_1 = arith.constant 0 : index
    %c0_2 = arith.constant 0 : index
    %2 = vector.load %arg2[%c0_1, %c0_2] : memref<300x400xbf16, #tpu.memory_space<vmem>>, vector<300x400xbf16>
    %cst = arith.constant dense<0.000000e+00> : vector<8x400xf32>
    %3 = tpu.matmul %1, %2, %cst {dimension_numbers = #tpu.dot_dimension_numbers<[1], [0], [0], [1], [0, 0, 1, 1], [], []>} : vector<8x300xbf16>, vector<300x400xbf16>, vector<8x400xf32> -> vector<8x400xf32>
    %c0_3 = arith.constant 0 : index
    %c0_4 = arith.constant 0 : index
    %4 = vector.load %arg3[%c0_3, %c0_4] : memref<1x400xf32, #tpu.memory_space<vmem>>, vector<1x400xf32>
    %5 = vector.broadcast %4 : vector<1x400xf32> to vector<8x400xf32>
    %6 = arith.addf %3, %5 : vector<8x400xf32>
    %cst_5 = arith.constant 0.000000e+00 : f32
    %7 = vector.broadcast %cst_5 : f32 to vector<8x400xf32>
    %8 = arith.maximumf %6, %7 : vector<8x400xf32>
    %9 = arith.truncf %8 : vector<8x400xf32> to vector<8x400xbf16>
    %c0_6 = arith.constant 0 : index
    %c0_7 = arith.constant 0 : index
    %10 = vector.load %arg4[%c0_6, %c0_7] : memref<400x200xbf16, #tpu.memory_space<vmem>>, vector<400x200xbf16>
    %cst_8 = arith.constant dense<0.000000e+00> : vector<8x200xf32>
    %11 = tpu.matmul %9, %10, %cst_8 {dimension_numbers = #tpu.dot_dimension_numbers<[1], [0], [0], [1], [0, 0, 1, 1], [], []>} : vector<8x400xbf16>, vector<400x200xbf16>, vector<8x200xf32> -> vector<8x200xf32>
    %c0_9 = arith.constant 0 : index
    %c0_10 = arith.constant 0 : index
    %12 = vector.load %arg5[%c0_9, %c0_10] : memref<1x200xf32, #tpu.memory_space<vmem>>, vector<1x200xf32>
    %13 = vector.broadcast %12 : vector<1x200xf32> to vector<8x200xf32>
    %14 = arith.addf %11, %13 : vector<8x200xf32>
    %cst_11 = arith.constant 0.000000e+00 : f32
    %15 = vector.broadcast %cst_11 : f32 to vector<8x200xf32>
    %16 = arith.maximumf %14, %15 : vector<8x200xf32>
    %17 = arith.truncf %16 : vector<8x200xf32> to vector<8x200xbf16>
    %c0_12 = arith.constant 0 : index
    %c0_13 = arith.constant 0 : index
    %18 = vector.load %arg6[%c0_12, %c0_13] : memref<200x100xbf16, #tpu.memory_space<vmem>>, vector<200x100xbf16>
    %cst_14 = arith.constant dense<0.000000e+00> : vector<8x100xf32>
    %19 = tpu.matmul %17, %18, %cst_14 {dimension_numbers = #tpu.dot_dimension_numbers<[1], [0], [0], [1], [0, 0, 1, 1], [], []>} : vector<8x200xbf16>, vector<200x100xbf16>, vector<8x100xf32> -> vector<8x100xf32>
    %c0_15 = arith.constant 0 : index
    %c0_16 = arith.constant 0 : index
    %20 = vector.load %arg7[%c0_15, %c0_16] : memref<1x100xf32, #tpu.memory_space<vmem>>, vector<1x100xf32>
    %21 = vector.broadcast %20 : vector<1x100xf32> to vector<8x100xf32>
    %22 = arith.addf %19, %21 : vector<8x100xf32>
    %cst_17 = arith.constant 0.000000e+00 : f32
    %23 = vector.broadcast %cst_17 : f32 to vector<8x100xf32>
    %24 = arith.maximumf %22, %23 : vector<8x100xf32>
    %25 = arith.truncf %24 : vector<8x100xf32> to vector<8x100xbf16>
    %c0_18 = arith.constant 0 : index
    %c0_19 = arith.constant 0 : index
    %26 = vector.load %arg8[%c0_18, %c0_19] : memref<100x10xbf16, #tpu.memory_space<vmem>>, vector<100x10xbf16>
    %cst_20 = arith.constant dense<0.000000e+00> : vector<8x10xf32>
    %27 = tpu.matmul %25, %26, %cst_20 {dimension_numbers = #tpu.dot_dimension_numbers<[1], [0], [0], [1], [0, 0, 1, 1], [], []>} : vector<8x100xbf16>, vector<100x10xbf16>, vector<8x10xf32> -> vector<8x10xf32>
    %c0_21 = arith.constant 0 : index
    %c0_22 = arith.constant 0 : index
    %28 = vector.load %arg9[%c0_21, %c0_22] : memref<1x10xf32, #tpu.memory_space<vmem>>, vector<1x10xf32>
    %29 = vector.broadcast %28 : vector<1x10xf32> to vector<8x10xf32>
    %30 = arith.addf %27, %29 : vector<8x10xf32>
    %cst_23 = arith.constant 0.000000e+00 : f32
    %31 = vector.broadcast %cst_23 : f32 to vector<8x10xf32>
    %32 = arith.maximumf %30, %31 : vector<8x10xf32>
    %33 = arith.truncf %32 : vector<8x10xf32> to vector<8x10xbf16>
    %c0_24 = arith.constant 0 : index
    %c0_25 = arith.constant 0 : index
    %34 = vector.load %arg10[%c0_24, %c0_25] : memref<10x128xbf16, #tpu.memory_space<vmem>>, vector<10x128xbf16>
    %cst_26 = arith.constant dense<0.000000e+00> : vector<8x128xf32>
    %35 = tpu.matmul %33, %34, %cst_26 {dimension_numbers = #tpu.dot_dimension_numbers<[1], [0], [0], [1], [0, 0, 1, 1], [], []>} : vector<8x10xbf16>, vector<10x128xbf16>, vector<8x128xf32> -> vector<8x128xf32>
    %c0_27 = arith.constant 0 : index
    %c0_28 = arith.constant 0 : index
    %36 = vector.load %arg11[%c0_27, %c0_28] : memref<1x128xf32, #tpu.memory_space<vmem>>, vector<1x128xf32>
    %37 = vector.broadcast %36 : vector<1x128xf32> to vector<8x128xf32>
    %38 = arith.addf %35, %37 : vector<8x128xf32>
    %39 = tpu.iota {dimensions = array<i32: 1>} : vector<8x128xi32>
    %c1_i32 = arith.constant 1 : i32
    %40 = vector.broadcast %c1_i32 : i32 to vector<8x128xi32>
    %41 = arith.cmpi sge, %39, %40 : vector<8x128xi32>
    %c4_i32 = arith.constant 4 : i32
    %42 = vector.broadcast %c4_i32 : i32 to vector<8x128xi32>
    %43 = arith.cmpi slt, %39, %42 : vector<8x128xi32>
    %44 = arith.andi %41, %43 : vector<8x128xi1>
    %cst_29 = arith.constant 0xFF800000 : f32
    %45 = vector.broadcast %cst_29 : f32 to vector<8x128xf32>
    %46 = arith.select %44, %38, %45 : vector<8x128xi1>, vector<8x128xf32>
    %cst_30 = arith.constant dense<0xFF800000> : vector<8xf32>
    %47 = vector.multi_reduction <maximumf>, %46, %cst_30 [1] : vector<8x128xf32> to vector<8xf32>
    %48 = vector.shape_cast %47 : vector<8xf32> to vector<8x1xf32>
    %c0_i32 = arith.constant 0 : i32
    %49 = vector.broadcast %c0_i32 : i32 to vector<8x128xi32>
    %50 = arith.cmpi eq, %39, %49 : vector<8x128xi32>
    %cst_31 = arith.constant 0.000000e+00 : f32
    %51 = vector.broadcast %cst_31 : f32 to vector<8x128xf32>
    %52 = arith.subf %51, %38 : vector<8x128xf32>
    %53 = vector.broadcast %48 : vector<8x1xf32> to vector<8x128xf32>
    %54 = arith.subf %46, %53 : vector<8x128xf32>
    %55 = arith.select %50, %52, %54 : vector<8x128xi1>, vector<8x128xf32>
    %56 = math.exp %55 : vector<8x128xf32>
    %cst_32 = arith.constant 1.000000e+00 : f32
    %57 = vector.broadcast %cst_32 : f32 to vector<8x128xf32>
    %58 = arith.addf %57, %56 : vector<8x128xf32>
    %cst_33 = arith.constant 1.000000e+00 : f32
    %59 = vector.broadcast %cst_33 : f32 to vector<8x128xf32>
    %60 = arith.divf %59, %58 : vector<8x128xf32>
    %cst_34 = arith.constant 0.000000e+00 : f32
    %61 = vector.broadcast %cst_34 : f32 to vector<8x128xf32>
    %62 = arith.select %44, %56, %61 : vector<8x128xi1>, vector<8x128xf32>
    %cst_35 = arith.constant dense<0.000000e+00> : vector<8xf32>
    %63 = vector.multi_reduction <add>, %62, %cst_35 [1] : vector<8x128xf32> to vector<8xf32>
    %64 = vector.shape_cast %63 : vector<8xf32> to vector<8x1xf32>
    %65 = vector.broadcast %64 : vector<8x1xf32> to vector<8x128xf32>
    %66 = arith.divf %56, %65 : vector<8x128xf32>
    %c0_i32_36 = arith.constant 0 : i32
    %67 = vector.broadcast %c0_i32_36 : i32 to vector<8x128xi32>
    %68 = arith.cmpi eq, %39, %67 : vector<8x128xi32>
    %cst_37 = arith.constant 0.000000e+00 : f32
    %69 = vector.broadcast %cst_37 : f32 to vector<8x128xf32>
    %70 = arith.select %44, %66, %69 : vector<8x128xi1>, vector<8x128xf32>
    %71 = arith.select %68, %60, %70 : vector<8x128xi1>, vector<8x128xf32>
    %c0_38 = arith.constant 0 : index
    %c0_39 = arith.constant 0 : index
    %72 = vector.load %arg12[%c0_38, %c0_39] : memref<8x128xf32, #tpu.memory_space<vmem>>, vector<8x128xf32>
    tpu.vector_store %arg12[%c0_38, %c0_39], %71 {strides = array<i32>} : memref<8x128xf32, #tpu.memory_space<vmem>>, vector<8x128xf32>,
    return
  }
  func.func @transform_0(%arg0: i32) -> (i32, i32) {
    %c0_i32 = arith.constant 0 : i32
    %c0_i32_0 = arith.constant 0 : i32
    return %arg0, %c0_i32 : i32, i32
  }
  func.func @transform_1(%arg0: i32) -> (i32, i32) {
    %c0_i32 = arith.constant 0 : i32
    %c0_i32_0 = arith.constant 0 : i32
    %c0_i32_1 = arith.constant 0 : i32
    return %c0_i32, %c0_i32_0 : i32, i32
  }
  func.func @transform_2(%arg0: i32) -> (i32, i32) {
    %c0_i32 = arith.constant 0 : i32
    %c0_i32_0 = arith.constant 0 : i32
    %c0_i32_1 = arith.constant 0 : i32
    return %c0_i32, %c0_i32_0 : i32, i32
  }
  func.func @transform_3(%arg0: i32) -> (i32, i32) {
    %c0_i32 = arith.constant 0 : i32
    %c0_i32_0 = arith.constant 0 : i32
    %c0_i32_1 = arith.constant 0 : i32
    return %c0_i32, %c0_i32_0 : i32, i32
  }
  func.func @transform_4(%arg0: i32) -> (i32, i32) {
    %c0_i32 = arith.constant 0 : i32
    %c0_i32_0 = arith.constant 0 : i32
    %c0_i32_1 = arith.constant 0 : i32
    return %c0_i32, %c0_i32_0 : i32, i32
  }
  func.func @transform_5(%arg0: i32) -> (i32, i32) {
    %c0_i32 = arith.constant 0 : i32
    %c0_i32_0 = arith.constant 0 : i32
    %c0_i32_1 = arith.constant 0 : i32
    return %c0_i32, %c0_i32_0 : i32, i32
  }
  func.func @transform_6(%arg0: i32) -> (i32, i32) {
    %c0_i32 = arith.constant 0 : i32
    %c0_i32_0 = arith.constant 0 : i32
    %c0_i32_1 = arith.constant 0 : i32
    return %c0_i32, %c0_i32_0 : i32, i32
  }
  func.func @transform_7(%arg0: i32) -> (i32, i32) {
    %c0_i32 = arith.constant 0 : i32
    %c0_i32_0 = arith.constant 0 : i32
    %c0_i32_1 = arith.constant 0 : i32
    return %c0_i32, %c0_i32_0 : i32, i32
  }
  func.func @transform_8(%arg0: i32) -> (i32, i32) {
    %c0_i32 = arith.constant 0 : i32
    %c0_i32_0 = arith.constant 0 : i32
    %c0_i32_1 = arith.constant 0 : i32
    return %c0_i32, %c0_i32_0 : i32, i32
  }
  func.func @transform_9(%arg0: i32) -> (i32, i32) {
    %c0_i32 = arith.constant 0 : i32
    %c0_i32_0 = arith.constant 0 : i32
    %c0_i32_1 = arith.constant 0 : i32
    return %c0_i32, %c0_i32_0 : i32, i32
  }
  func.func @transform_10(%arg0: i32) -> (i32, i32) {
    %c0_i32 = arith.constant 0 : i32
    %c0_i32_0 = arith.constant 0 : i32
    %c0_i32_1 = arith.constant 0 : i32
    return %c0_i32, %c0_i32_0 : i32, i32
  }
  func.func @transform_11(%arg0: i32) -> (i32, i32) {
    %c0_i32 = arith.constant 0 : i32
    %c0_i32_0 = arith.constant 0 : i32
    return %arg0, %c0_i32 : i32, i32
  }
}

</mosaic_0001>

<llo_original>
// kernel: tpu_custom_call.1
$region0: #{tpu_custom_call.1}
  #allocation0 [shape = 'u32[]', space=smem, size = 0x4, offset = 0x4, fixed_abs, tag = 'smem constant byte address 0x4 - core index']
  #allocation1 [shape = 'u32[144,128]{1,0:T(1,128)}', space=vmem, size = 0x12000, scoped, tag = 'internal scratch']
  %s0 = inlined_call_operand.vmem [shape: f32[8,300], index: 0, kind: input, shape index: {}]
  %s1 = inlined_call_operand.vmem [shape: bf16[300,400], index: 1, kind: input, shape index: {}]
  %s2 = inlined_call_operand.vmem [shape: f32[1,400], index: 2, kind: input, shape index: {}]
  %s3 = inlined_call_operand.vmem [shape: bf16[400,200], index: 3, kind: input, shape index: {}]
  %s4 = inlined_call_operand.vmem [shape: f32[1,200], index: 4, kind: input, shape index: {}]
  %s5 = inlined_call_operand.vmem [shape: bf16[200,100], index: 5, kind: input, shape index: {}]
  %s6 = inlined_call_operand.vmem [shape: f32[1,100], index: 6, kind: input, shape index: {}]
  %s7 = inlined_call_operand.vmem [shape: bf16[100,10], index: 7, kind: input, shape index: {}]
  %s8 = inlined_call_operand.vmem [shape: f32[1,10], index: 8, kind: input, shape index: {}]
  %s9 = inlined_call_operand.vmem [shape: bf16[10,128], index: 9, kind: input, shape index: {}]
  %s10 = inlined_call_operand.vmem [shape: f32[1,128], index: 10, kind: input, shape index: {}]
  %s11 = inlined_call_operand.hbm [shape: f32[8,128], index: 11, kind: output, shape index: {}]
  %s12 = sld [smem:[#allocation0]]
  $region54: #{tpu_custom_call.1} parent=0
    _
  %s14 = ssub.s32 1, %s12
  %s15 = scalar_select 0, %s14, %s12
  $region1: #{tpu_custom_call.1} parent=0
    #allocation2 [shape = 'u8[4096]{0}', space=vmem, size = 0x1000, scoped, tag = 'output window, operand 0, single buffered']
    #allocation3 [shape = 's32[1]{0}', space=sflag, size = 0x4, scoped, tag = 'scoped memory for tpu_custom_call.1']
    %16 = vsyncpa [#allocation3], 0
    // Predicated region
    $region2: #{tpu_custom_call.1} parent=1 // pred_check
      _
    $region3: #{tpu_custom_call.1} parent=1 // pred_check_branch
      %18 = sbr.rel (0) target = $region5
    $region4: #{tpu_custom_call.1} parent=1 // pred_region
      _
    $region5: #{tpu_custom_call.1} parent=1 // pred_fallthru
      _
    // Predicated region
    $region6: #{tpu_custom_call.1} parent=1 // pred_check
      _
    $region7: #{tpu_custom_call.1} parent=1 // pred_check_branch
      %20 = sbr.rel (0) target = $region9
    $region8: #{tpu_custom_call.1} parent=1 // pred_region
      _
    $region9: #{tpu_custom_call.1} parent=1 // pred_fallthru
      _
    // Predicated region
    $region10: #{tpu_custom_call.1} parent=1 // pred_check
      _
    $region11: #{tpu_custom_call.1} parent=1 // pred_check_branch
      %22 = sbr.rel (0) target = $region13
    $region12: #{tpu_custom_call.1} parent=1 // pred_region
      _
    $region13: #{tpu_custom_call.1} parent=1 // pred_fallthru
      _
    // Predicated region
    $region14: #{tpu_custom_call.1} parent=1 // pred_check
      _
    $region15: #{tpu_custom_call.1} parent=1 // pred_check_branch
      %24 = sbr.rel (0) target = $region17
    $region16: #{tpu_custom_call.1} parent=1 // pred_region
      _
    $region17: #{tpu_custom_call.1} parent=1 // pred_fallthru
      _
    // Predicated region
    $region18: #{tpu_custom_call.1} parent=1 // pred_check
      _
    $region19: #{tpu_custom_call.1} parent=1 // pred_check_branch
      %26 = sbr.rel (0) target = $region21
    $region20: #{tpu_custom_call.1} parent=1 // pred_region
      _
    $region21: #{tpu_custom_call.1} parent=1 // pred_fallthru
      _
    // Predicated region
    $region22: #{tpu_custom_call.1} parent=1 // pred_check
      _
    $region23: #{tpu_custom_call.1} parent=1 // pred_check_branch
      %28 = sbr.rel (0) target = $region25
    $region24: #{tpu_custom_call.1} parent=1 // pred_region
      _
    $region25: #{tpu_custom_call.1} parent=1 // pred_fallthru
      _
    // Predicated region
    $region26: #{tpu_custom_call.1} parent=1 // pred_check
      _
    $region27: #{tpu_custom_call.1} parent=1 // pred_check_branch
      %30 = sbr.rel (0) target = $region29
    $region28: #{tpu_custom_call.1} parent=1 // pred_region
      _
    $region29: #{tpu_custom_call.1} parent=1 // pred_fallthru
      _
    // Predicated region
    $region30: #{tpu_custom_call.1} parent=1 // pred_check
      _
    $region31: #{tpu_custom_call.1} parent=1 // pred_check_branch
      %32 = sbr.rel (0) target = $region33
    $region32: #{tpu_custom_call.1} parent=1 // pred_region
      _
    $region33: #{tpu_custom_call.1} parent=1 // pred_fallthru
      _
    // Predicated region
    $region34: #{tpu_custom_call.1} parent=1 // pred_check
      _
    $region35: #{tpu_custom_call.1} parent=1 // pred_check_branch
      %34 = sbr.rel (0) target = $region37
    $region36: #{tpu_custom_call.1} parent=1 // pred_region
      _
    $region37: #{tpu_custom_call.1} parent=1 // pred_fallthru
      _
    // Predicated region
    $region38: #{tpu_custom_call.1} parent=1 // pred_check
      _
    $region39: #{tpu_custom_call.1} parent=1 // pred_check_branch
      %36 = sbr.rel (0) target = $region41
    $region40: #{tpu_custom_call.1} parent=1 // pred_region
      _
    $region41: #{tpu_custom_call.1} parent=1 // pred_fallthru
      _
    // Predicated region
    $region42: #{tpu_custom_call.1} parent=1 // pred_check
      _
    $region43: #{tpu_custom_call.1} parent=1 // pred_check_branch
      %38 = sbr.rel (0) target = $region45
    $region44: #{tpu_custom_call.1} parent=1 // pred_region
      _
    $region45: #{tpu_custom_call.1} parent=1 // pred_fallthru
      _
    %v40 = vld [vmem:[%s0] sm:$0xff]
    %v41 = vld [vmem:[%s0 + $0x8] sm:$0xff]
    %v42 = vld [vmem:[%s0 + $0x10] sm:$0xff]
    %v43 = vpack.c.bf16 %v40, %v40
    %v44 = vpack.c.bf16 %v41, %v41
    %v45 = vpack.c.bf16 %v42, %v42
    %v46 = vld [vmem:[%s1] sm:$0xff]
    %v47 = vld [vmem:[%s1 + $0x8] sm:$0xff]
    %v48 = vld [vmem:[%s1 + $0x10] sm:$0xff]
    %v49 = vld [vmem:[%s1 + $0x18] sm:$0xff]
    %v50 = vld [vmem:[%s1 + $0x20] sm:$0xff]
    %v51 = vld [vmem:[%s1 + $0x28] sm:$0xff]
    %v52 = vld [vmem:[%s1 + $0x30] sm:$0xff]
    %v53 = vld [vmem:[%s1 + $0x38] sm:$0xff]
    %v54 = vld [vmem:[%s1 + $0x40] sm:$0xff]
    %v55 = vld [vmem:[%s1 + $0x48] sm:$0xff]
    %v56 = vld [vmem:[%s1 + $0x50] sm:$0xff]
    %v57 = vld [vmem:[%s1 + $0x58] sm:$0xff]
    %v58 = vld [vmem:[%s1 + $0x60] sm:$0xff]
    %v59 = vld [vmem:[%s1 + $0x68] sm:$0xff]
    %v60 = vld [vmem:[%s1 + $0x70] sm:$0xff]
    %v61 = vld [vmem:[%s1 + $0x78] sm:$0xff]
    %v62 = vld [vmem:[%s1 + $0x80] sm:$0xff]
    %v63 = vld [vmem:[%s1 + $0x88] sm:$0xff]
    %v64 = vld [vmem:[%s1 + $0x90] sm:$0xff]
    %v65 = vld [vmem:[%s1 + $0x98] sm:$0xff]
    %v66 = vld [vmem:[%s1 + $0xa0] sm:$0xff]
    %v67 = vld [vmem:[%s1 + $0xa8] sm:$0xff]
    %v68 = vld [vmem:[%s1 + $0xb0] sm:$0xff]
    %v69 = vld [vmem:[%s1 + $0xb8] sm:$0xff]
    %v70 = vld [vmem:[%s1 + $0xc0] sm:$0xff]
    %v71 = vld [vmem:[%s1 + $0xc8] sm:$0xff]
    %v72 = vld [vmem:[%s1 + $0xd0] sm:$0xff]
    %v73 = vld [vmem:[%s1 + $0xd8] sm:$0xff]
    %v74 = vld [vmem:[%s1 + $0xe0] sm:$0xff]
    %v75 = vld [vmem:[%s1 + $0xe8] sm:$0xff]
    %v76 = vld [vmem:[%s1 + $0xf0] sm:$0xff]
    %v77 = vld [vmem:[%s1 + $0xf8] sm:$0xff]
    %v78 = vld [vmem:[%s1 + $0x100] sm:$0xff]
    %v79 = vld [vmem:[%s1 + $0x108] sm:$0xff]
    %v80 = vld [vmem:[%s1 + $0x110] sm:$0xff]
    %v81 = vld [vmem:[%s1 + $0x118] sm:$0xff]
    %v82 = vld [vmem:[%s1 + $0x120] sm:$0xff]
    %v83 = vld [vmem:[%s1 + $0x128] sm:$0xff]
    %v84 = vld [vmem:[%s1 + $0x130] sm:$0xff]
    %v85 = vld [vmem:[%s1 + $0x138] sm:$0xff]
    %v86 = vld [vmem:[%s1 + $0x140] sm:$0xff]
    %v87 = vld [vmem:[%s1 + $0x148] sm:$0xff]
    %v88 = vld [vmem:[%s1 + $0x150] sm:$0xff]
    %v89 = vld [vmem:[%s1 + $0x158] sm:$0xff]
    %v90 = vld [vmem:[%s1 + $0x160] sm:$0xff]
    %v91 = vld [vmem:[%s1 + $0x168] sm:$0xff]
    %v92 = vld [vmem:[%s1 + $0x170] sm:$0xff]
    %v93 = vld [vmem:[%s1 + $0x178] sm:$0xff]
    %v94 = vld [vmem:[%s1 + $0x180] sm:$0xff]
    %v95 = vld [vmem:[%s1 + $0x188] sm:$0xff]
    %v96 = vld [vmem:[%s1 + $0x190] sm:$0xff]
    %v97 = vld [vmem:[%s1 + $0x198] sm:$0xff]
    %v98 = vld [vmem:[%s1 + $0x1a0] sm:$0xff]
    %v99 = vld [vmem:[%s1 + $0x1a8] sm:$0xff]
    %v100 = vld [vmem:[%s1 + $0x1b0] sm:$0xff]
    %v101 = vld [vmem:[%s1 + $0x1b8] sm:$0xff]
    %v102 = vld [vmem:[%s1 + $0x1c0] sm:$0xff]
    %v103 = vld [vmem:[%s1 + $0x1c8] sm:$0xff]
    %v104 = vld [vmem:[%s1 + $0x1d0] sm:$0xff]
    %v105 = vld [vmem:[%s1 + $0x1d8] sm:$0xff]
    %v106 = vld [vmem:[%s1 + $0x1e0] sm:$0xff]
    %v107 = vld [vmem:[%s1 + $0x1e8] sm:$0xff]
    %v108 = vld [vmem:[%s1 + $0x1f0] sm:$0xff]
    %v109 = vld [vmem:[%s1 + $0x1f8] sm:$0xff]
    %v110 = vld [vmem:[%s1 + $0x200] sm:$0xff]
    %v111 = vld [vmem:[%s1 + $0x208] sm:$0xff]
    %v112 = vld [vmem:[%s1 + $0x210] sm:$0xff]
    %v113 = vld [vmem:[%s1 + $0x218] sm:$0xff]
    %v114 = vld [vmem:[%s1 + $0x220] sm:$0xff]
    %v115 = vld [vmem:[%s1 + $0x228] sm:$0xff]
    %v116 = vld [vmem:[%s1 + $0x230] sm:$0xff]
    %v117 = vld [vmem:[%s1 + $0x238] sm:$0xff]
    %v118 = vld [vmem:[%s1 + $0x240] sm:$0xff]
    %v119 = vld [vmem:[%s1 + $0x248] sm:$0xff]
    %v120 = vld [vmem:[%s1 + $0x250] sm:$0x33]
    %v121 = vld [vmem:[%s1 + $0x258] sm:$0x33]
    %v122 = vld [vmem:[%s2] sm:$0xf]
    %v124 = vlaneseq
    %v125 = vshrl.u32 %v124, 7
    %v126 = vsub.s32 0, %v125
    %v127 = vrot.slane %v122, %v126
    %v128 = vlaneseq
    %v129 = vshrl.u32 %v128, 7
    %v130 = vsub.s32 1, %v129
    %v131 = vrot.slane %v122, %v130
    %v132 = vlaneseq
    %v133 = vshrl.u32 %v132, 7
    %v134 = vsub.s32 2, %v133
    %v135 = vrot.slane %v122, %v134
    %v136 = vlaneseq
    %v137 = vshrl.u32 %v136, 7
    %v138 = vsub.s32 3, %v137
    %v139 = vrot.slane %v122, %v138
    %v220 = vunpack.c.l.b16 %v46
    %v221 = vunpack.c.h.b16 %v46
    %v222 = vunpack.c.l.b16 %v47
    %v223 = vunpack.c.h.b16 %v47
    %v224 = vunpack.c.l.b16 %v48
    %v225 = vunpack.c.h.b16 %v48
    %v226 = vunpack.c.l.b16 %v49
    %v227 = vunpack.c.h.b16 %v49
    %v228 = vunpack.c.l.b16 %v50
    %v229 = vunpack.c.h.b16 %v50
    %v230 = vunpack.c.l.b16 %v51
    %v231 = vunpack.c.h.b16 %v51
    %v232 = vunpack.c.l.b16 %v52
    %v233 = vunpack.c.h.b16 %v52
    %v234 = vunpack.c.l.b16 %v53
    %v235 = vunpack.c.h.b16 %v53
    %v236 = vunpack.c.l.b16 %v54
    %v237 = vunpack.c.h.b16 %v54
    %v238 = vunpack.c.l.b16 %v55
    %v239 = vunpack.c.h.b16 %v55
    %v240 = vunpack.c.l.b16 %v56
    %v241 = vunpack.c.h.b16 %v56
    %v242 = vunpack.c.l.b16 %v57
    %v243 = vunpack.c.h.b16 %v57
    %v244 = vunpack.c.l.b16 %v58
    %v245 = vunpack.c.h.b16 %v58
    %v246 = vunpack.c.l.b16 %v59
    %v247 = vunpack.c.h.b16 %v59
    %v248 = vunpack.c.l.b16 %v60
    %v249 = vunpack.c.h.b16 %v60
    %v250 = vunpack.c.l.b16 %v61
    %v251 = vunpack.c.h.b16 %v61
    %v252 = vunpack.c.l.b16 %v62
    %v253 = vunpack.c.h.b16 %v62
    %v254 = vunpack.c.l.b16 %v63
    %v255 = vunpack.c.h.b16 %v63
    %v256 = vunpack.c.l.b16 %v64
    %v257 = vunpack.c.h.b16 %v64
    %v258 = vunpack.c.l.b16 %v65
    %v259 = vunpack.c.h.b16 %v65
    %v260 = vunpack.c.l.b16 %v66
    %v261 = vunpack.c.h.b16 %v66
    %v262 = vunpack.c.l.b16 %v67
    %v263 = vunpack.c.h.b16 %v67
    %v264 = vunpack.c.l.b16 %v68
    %v265 = vunpack.c.h.b16 %v68
    %v266 = vunpack.c.l.b16 %v69
    %v267 = vunpack.c.h.b16 %v69
    %v268 = vunpack.c.l.b16 %v70
    %v269 = vunpack.c.h.b16 %v70
    %v270 = vunpack.c.l.b16 %v71
    %v271 = vunpack.c.h.b16 %v71
    %v272 = vunpack.c.l.b16 %v72
    %v273 = vunpack.c.h.b16 %v72
    %v274 = vunpack.c.l.b16 %v73
    %v275 = vunpack.c.h.b16 %v73
    %v276 = vunpack.c.l.b16 %v74
    %v277 = vunpack.c.h.b16 %v74
    %v278 = vunpack.c.l.b16 %v75
    %v279 = vunpack.c.h.b16 %v75
    %v280 = vunpack.c.l.b16 %v76
    %v281 = vunpack.c.h.b16 %v76
    %v282 = vunpack.c.l.b16 %v77
    %v283 = vunpack.c.h.b16 %v77
    %v284 = vunpack.c.l.b16 %v78
    %v285 = vunpack.c.h.b16 %v78
    %v286 = vunpack.c.l.b16 %v79
    %v287 = vunpack.c.h.b16 %v79
    %v288 = vunpack.c.l.b16 %v80
    %v289 = vunpack.c.h.b16 %v80
    %v290 = vunpack.c.l.b16 %v81
    %v291 = vunpack.c.h.b16 %v81
    %v292 = vunpack.c.l.b16 %v82
    %v293 = vunpack.c.h.b16 %v82
    %v294 = vunpack.c.l.b16 %v83
    %v295 = vunpack.c.h.b16 %v83
    %v296 = vunpack.c.l.b16 %v84
    %v297 = vunpack.c.h.b16 %v84
    %v298 = vunpack.c.l.b16 %v85
    %v299 = vunpack.c.h.b16 %v85
    %v300 = vunpack.c.l.b16 %v86
    %v301 = vunpack.c.h.b16 %v86
    %v302 = vunpack.c.l.b16 %v87
    %v303 = vunpack.c.h.b16 %v87
    %v304 = vunpack.c.l.b16 %v88
    %v305 = vunpack.c.h.b16 %v88
    %v306 = vunpack.c.l.b16 %v89
    %v307 = vunpack.c.h.b16 %v89
    %v308 = vunpack.c.l.b16 %v90
    %v309 = vunpack.c.h.b16 %v90
    %v310 = vunpack.c.l.b16 %v91
    %v311 = vunpack.c.h.b16 %v91
    %v312 = vunpack.c.l.b16 %v92
    %v313 = vunpack.c.h.b16 %v92
    %v314 = vunpack.c.l.b16 %v93
    %v315 = vunpack.c.h.b16 %v93
    %v316 = vunpack.c.l.b16 %v94
    %v317 = vunpack.c.h.b16 %v94
    %v318 = vunpack.c.l.b16 %v95
    %v319 = vunpack.c.h.b16 %v95
    %v320 = vunpack.c.l.b16 %v96
    %v321 = vunpack.c.h.b16 %v96
    %v322 = vunpack.c.l.b16 %v97
    %v323 = vunpack.c.h.b16 %v97
    %v324 = vunpack.c.l.b16 %v98
    %v325 = vunpack.c.h.b16 %v98
    %v326 = vunpack.c.l.b16 %v99
    %v327 = vunpack.c.h.b16 %v99
    %v328 = vunpack.c.l.b16 %v100
    %v329 = vunpack.c.h.b16 %v100
    %v330 = vunpack.c.l.b16 %v101
    %v331 = vunpack.c.h.b16 %v101
    %v332 = vunpack.c.l.b16 %v102
    %v333 = vunpack.c.h.b16 %v102
    %v334 = vunpack.c.l.b16 %v103
    %v335 = vunpack.c.h.b16 %v103
    %v336 = vunpack.c.l.b16 %v104
    %v337 = vunpack.c.h.b16 %v104
    %v338 = vunpack.c.l.b16 %v105
    %v339 = vunpack.c.h.b16 %v105
    %v340 = vunpack.c.l.b16 %v106
    %v341 = vunpack.c.h.b16 %v106
    %v342 = vunpack.c.l.b16 %v107
    %v343 = vunpack.c.h.b16 %v107
    %v344 = vunpack.c.l.b16 %v108
    %v345 = vunpack.c.h.b16 %v108
    %v346 = vunpack.c.l.b16 %v109
    %v347 = vunpack.c.h.b16 %v109
    %v348 = vunpack.c.l.b16 %v110
    %v349 = vunpack.c.h.b16 %v110
    %v350 = vunpack.c.l.b16 %v111
    %v351 = vunpack.c.h.b16 %v111
    %v352 = vunpack.c.l.b16 %v112
    %v353 = vunpack.c.h.b16 %v112
    %v354 = vunpack.c.l.b16 %v113
    %v355 = vunpack.c.h.b16 %v113
    %v356 = vunpack.c.l.b16 %v114
    %v357 = vunpack.c.h.b16 %v114
    %v358 = vunpack.c.l.b16 %v115
    %v359 = vunpack.c.h.b16 %v115
    %v360 = vunpack.c.l.b16 %v116
    %v361 = vunpack.c.h.b16 %v116
    %v362 = vunpack.c.l.b16 %v117
    %v363 = vunpack.c.h.b16 %v117
    %v364 = vunpack.c.l.b16 %v118
    %v365 = vunpack.c.h.b16 %v118
    %v366 = vunpack.c.l.b16 %v119
    %v367 = vunpack.c.h.b16 %v119
    %v368 = vunpack.c.l.b16 %v120
    %v369 = vunpack.c.h.b16 %v120
    %v370 = vunpack.c.l.b16 %v121
    %v371 = vunpack.c.h.b16 %v121
    %v372 = vpack.c.b16 %v224, %v220
    %v373 = vpack.c.b16 %v225, %v221
    %v374 = vpack.c.b16 %v226, %v222
    %v375 = vpack.c.b16 %v227, %v223
    %v376 = vpack.c.b16 %v232, %v228
    %v377 = vpack.c.b16 %v233, %v229
    %v378 = vpack.c.b16 %v234, %v230
    %v379 = vpack.c.b16 %v235, %v231
    %v380 = vpack.c.b16 %v240, %v236
    %v381 = vpack.c.b16 %v241, %v237
    %v382 = vpack.c.b16 %v242, %v238
    %v383 = vpack.c.b16 %v243, %v239
    %v384 = vpack.c.b16 %v248, %v244
    %v385 = vpack.c.b16 %v249, %v245
    %v386 = vpack.c.b16 %v250, %v246
    %v387 = vpack.c.b16 %v251, %v247
    %v388 = vpack.c.b16 %v256, %v252
    %v389 = vpack.c.b16 %v257, %v253
    %v390 = vpack.c.b16 %v258, %v254
    %v391 = vpack.c.b16 %v259, %v255
    %v392 = vpack.c.b16 %v264, %v260
    %v393 = vpack.c.b16 %v265, %v261
    %v394 = vpack.c.b16 %v266, %v262
    %v395 = vpack.c.b16 %v267, %v263
    %v396 = vpack.c.b16 %v272, %v268
    %v397 = vpack.c.b16 %v273, %v269
    %v398 = vpack.c.b16 %v274, %v270
    %v399 = vpack.c.b16 %v275, %v271
    %v400 = vpack.c.b16 %v280, %v276
    %v401 = vpack.c.b16 %v281, %v277
    %v402 = vpack.c.b16 %v282, %v278
    %v403 = vpack.c.b16 %v283, %v279
    %v404 = vpack.c.b16 %v288, %v284
    %v405 = vpack.c.b16 %v289, %v285
    %v406 = vpack.c.b16 %v290, %v286
    %v407 = vpack.c.b16 %v291, %v287
    %v408 = vpack.c.b16 %v296, %v292
    %v409 = vpack.c.b16 %v297, %v293
    %v410 = vpack.c.b16 %v298, %v294
    %v411 = vpack.c.b16 %v299, %v295
    %v412 = vpack.c.b16 %v304, %v300
    %v413 = vpack.c.b16 %v305, %v301
    %v414 = vpack.c.b16 %v306, %v302
    %v415 = vpack.c.b16 %v307, %v303
    %v416 = vpack.c.b16 %v312, %v308
    %v417 = vpack.c.b16 %v313, %v309
    %v418 = vpack.c.b16 %v314, %v310
    %v419 = vpack.c.b16 %v315, %v311
    %v420 = vpack.c.b16 %v320, %v316
    %v421 = vpack.c.b16 %v321, %v317
    %v422 = vpack.c.b16 %v322, %v318
    %v423 = vpack.c.b16 %v323, %v319
    %v424 = vpack.c.b16 %v328, %v324
    %v425 = vpack.c.b16 %v329, %v325
    %v426 = vpack.c.b16 %v330, %v326
    %v427 = vpack.c.b16 %v331, %v327
    %v428 = vpack.c.b16 %v336, %v332
    %v429 = vpack.c.b16 %v337, %v333
    %v430 = vpack.c.b16 %v338, %v334
    %v431 = vpack.c.b16 %v339, %v335
    %v432 = vpack.c.b16 %v344, %v340
    %v433 = vpack.c.b16 %v345, %v341
    %v434 = vpack.c.b16 %v346, %v342
    %v435 = vpack.c.b16 %v347, %v343
    %v436 = vpack.c.b16 %v352, %v348
    %v437 = vpack.c.b16 %v353, %v349
    %v438 = vpack.c.b16 %v354, %v350
    %v439 = vpack.c.b16 %v355, %v351
    %v440 = vpack.c.b16 %v360, %v356
    %v441 = vpack.c.b16 %v361, %v357
    %v442 = vpack.c.b16 %v362, %v358
    %v443 = vpack.c.b16 %v363, %v359
    %v444 = vpack.c.b16 %v368, %v364
    %v445 = vpack.c.b16 %v369, %v365
    %v446 = vpack.c.b16 %v370, %v366
    %v447 = vpack.c.b16 %v371, %v367
    %vm520 = vcmask 359424
    %v522 = vsel %vm520, %v45, 0
    %vm524 = vcmask 1045504
    %v526 = vsel %vm524, %v444, 0
    %v529 = vsel %vm524, %v445, 0
    %v532 = vsel %vm524, %v446, 0
    %v535 = vsel %vm524, %v447, 0
    %537 = vmatprep.subr.bf16.mxu0 %v373
    %538 = vmatpush1.bf16.msra.mxu0 %v372
    %539 = vmatprep.subr.bf16.mxu0 %v377
    %540 = vmatpush1.bf16.msra.mxu0 %v376
    %541 = vmatprep.subr.bf16.mxu0 %v381
    %542 = vmatpush1.bf16.msra.mxu0 %v380
    %543 = vmatprep.subr.bf16.mxu0 %v385
    %544 = vmatpush1.bf16.msra.mxu0 %v384
    %545 = vmatprep.subr.bf16.mxu0 %v389
    %546 = vmatpush1.bf16.msra.mxu0 %v388
    %547 = vmatprep.subr.bf16.mxu0 %v393
    %548 = vmatpush1.bf16.msra.mxu0 %v392
    %549 = vmatprep.subr.bf16.mxu0 %v397
    %550 = vmatpush1.bf16.msra.mxu0 %v396
    %551 = vmatprep.subr.bf16.mxu0 %v401
    %552 = vmatpush1.bf16.msra.mxu0 %v400
    %553 = vmatprep.subr.bf16.mxu0 %v405
    %554 = vmatpush1.bf16.msra.mxu0 %v404
    %555 = vmatprep.subr.bf16.mxu0 %v409
    %556 = vmatpush1.bf16.msra.mxu0 %v408
    %557 = vmatprep.subr.bf16.mxu0 %v413
    %558 = vmatpush1.bf16.msra.mxu0 %v412
    %559 = vmatprep.subr.bf16.mxu0 %v417
    %560 = vmatpush1.bf16.msra.mxu0 %v416
    %561 = vmatprep.subr.bf16.mxu0 %v421
    %562 = vmatpush1.bf16.msra.mxu0 %v420
    %563 = vmatprep.subr.bf16.mxu0 %v425
    %564 = vmatpush1.bf16.msra.mxu0 %v424
    %565 = vmatprep.subr.bf16.mxu0 %v429
    %566 = vmatpush1.bf16.msra.mxu0 %v428
    %567 = vmatprep.subr.bf16.mxu0 %v433
    %568 = vmatpush1.bf16.msra.mxu0 %v432
    %569 = vmatprep.mubr.bf16.mxu0 %v44
    %570 = vmatmul.mubr.bf16.gmra.mrb[0].mxu0 %v43
    %v571 = vpop.f32.mrb[0].mxu0
    %v572 = vadd.f32 %v127, %v571
    %v573 = vpop.f32.mrb[0].mxu0
    %v574 = vadd.f32 %v131, %v573
    %v575 = vpop.f32.mrb[0].mxu0
    %v576 = vpop.f32.mrb[0].mxu0
    %577 = vdwg.mxu0
    %578 = vmatprep.subr.bf16.mxu0 %v437
    %579 = vmatpush1.bf16.msra.mxu0 %v436
    %580 = vmatprep.subr.bf16.mxu0 %v441
    %581 = vmatpush1.bf16.msra.mxu0 %v440
    %582 = vmatprep.subr.bf16.mxu0 %v529
    %583 = vmatpush1.bf16.msra.mxu0 %v526
    %584 = vmatprep.subr.bf16.mxu0 0
    %585 = vmatpush1.bf16.msra.mxu0 0
    %586 = vmatprep.subr.bf16.mxu0 0
    %587 = vmatpush1.bf16.msra.mxu0 0
    %588 = vmatprep.subr.bf16.mxu0 0
    %589 = vmatpush1.bf16.msra.mxu0 0
    %590 = vmatprep.subr.bf16.mxu0 0
    %591 = vmatpush1.bf16.msra.mxu0 0
    %592 = vmatprep.subr.bf16.mxu0 0
    %593 = vmatpush1.bf16.msra.mxu0 0
    %594 = vmatprep.subr.bf16.mxu0 0
    %595 = vmatpush1.bf16.msra.mxu0 0
    %596 = vmatprep.subr.bf16.mxu0 0
    %597 = vmatpush1.bf16.msra.mxu0 0
    %598 = vmatprep.subr.bf16.mxu0 0
    %599 = vmatpush1.bf16.msra.mxu0 0
    %600 = vmatprep.subr.bf16.mxu0 0
    %601 = vmatpush1.bf16.msra.mxu0 0
    %602 = vmatprep.subr.bf16.mxu0 0
    %603 = vmatpush1.bf16.msra.mxu0 0
    %604 = vmatprep.subr.bf16.mxu0 0
    %605 = vmatpush1.bf16.msra.mxu0 0
    %606 = vmatprep.subr.bf16.mxu0 0
    %607 = vmatpush1.bf16.msra.mxu0 0
    %608 = vmatprep.subr.bf16.mxu0 0
    %609 = vmatpush1.bf16.msra.mxu0 0
    %610 = vmatprep.mubr.bf16.mxu0 0
    %611 = vmatmul.mubr.bf16.gmra.mrb[0].mxu0 %v522
    %v612 = vpop.f32.mrb[0].mxu0
    %v613 = vadd.f32 %v572, %v612
    %v614 = vpop.f32.mrb[0].mxu0
    %v615 = vadd.f32 %v574, %v614
    %v616 = vpop.f32.mrb[0].mxu0
    %v617 = vpop.f32.mrb[0].mxu0
    %618 = vdwg.mxu0
    %619 = vmatprep.subr.bf16.mxu0 %v375
    %620 = vmatpush1.bf16.msra.mxu0 %v374
    %621 = vmatprep.subr.bf16.mxu0 %v379
    %622 = vmatpush1.bf16.msra.mxu0 %v378
    %623 = vmatprep.subr.bf16.mxu0 %v383
    %624 = vmatpush1.bf16.msra.mxu0 %v382
    %625 = vmatprep.subr.bf16.mxu0 %v387
    %626 = vmatpush1.bf16.msra.mxu0 %v386
    %627 = vmatprep.subr.bf16.mxu0 %v391
    %628 = vmatpush1.bf16.msra.mxu0 %v390
    %629 = vmatprep.subr.bf16.mxu0 %v395
    %630 = vmatpush1.bf16.msra.mxu0 %v394
    %631 = vmatprep.subr.bf16.mxu0 %v399
    %632 = vmatpush1.bf16.msra.mxu0 %v398
    %633 = vmatprep.subr.bf16.mxu0 %v403
    %634 = vmatpush1.bf16.msra.mxu0 %v402
    %635 = vmatprep.subr.bf16.mxu0 %v407
    %636 = vmatpush1.bf16.msra.mxu0 %v406
    %637 = vmatprep.subr.bf16.mxu0 %v411
    %638 = vmatpush1.bf16.msra.mxu0 %v410
    %639 = vmatprep.subr.bf16.mxu0 %v415
    %640 = vmatpush1.bf16.msra.mxu0 %v414
    %641 = vmatprep.subr.bf16.mxu0 %v419
    %642 = vmatpush1.bf16.msra.mxu0 %v418
    %643 = vmatprep.subr.bf16.mxu0 %v423
    %644 = vmatpush1.bf16.msra.mxu0 %v422
    %645 = vmatprep.subr.bf16.mxu0 %v427
    %646 = vmatpush1.bf16.msra.mxu0 %v426
    %647 = vmatprep.subr.bf16.mxu0 %v431
    %648 = vmatpush1.bf16.msra.mxu0 %v430
    %649 = vmatprep.subr.bf16.mxu0 %v435
    %650 = vmatpush1.bf16.msra.mxu0 %v434
    %651 = vmatprep.mubr.bf16.mxu0 %v44
    %652 = vmatmul.mubr.bf16.gmra.mrb[0].mxu0 %v43
    %v653 = vpop.f32.mrb[0].mxu0
    %v654 = vadd.f32 %v135, %v653
    %v655 = vpop.f32.mrb[0].mxu0
    %v656 = vadd.f32 %v139, %v655
    %v657 = vpop.f32.mrb[0].mxu0
    %v658 = vpop.f32.mrb[0].mxu0
    %659 = vdwg.mxu0
    %660 = vmatprep.subr.bf16.mxu0 %v439
    %661 = vmatpush1.bf16.msra.mxu0 %v438
    %662 = vmatprep.subr.bf16.mxu0 %v443
    %663 = vmatpush1.bf16.msra.mxu0 %v442
    %664 = vmatprep.subr.bf16.mxu0 %v535
    %665 = vmatpush1.bf16.msra.mxu0 %v532
    %666 = vmatprep.subr.bf16.mxu0 0
    %667 = vmatpush1.bf16.msra.mxu0 0
    %668 = vmatprep.subr.bf16.mxu0 0
    %669 = vmatpush1.bf16.msra.mxu0 0
    %670 = vmatprep.subr.bf16.mxu0 0
    %671 = vmatpush1.bf16.msra.mxu0 0
    %672 = vmatprep.subr.bf16.mxu0 0
    %673 = vmatpush1.bf16.msra.mxu0 0
    %674 = vmatprep.subr.bf16.mxu0 0
    %675 = vmatpush1.bf16.msra.mxu0 0
    %676 = vmatprep.subr.bf16.mxu0 0
    %677 = vmatpush1.bf16.msra.mxu0 0
    %678 = vmatprep.subr.bf16.mxu0 0
    %679 = vmatpush1.bf16.msra.mxu0 0
    %680 = vmatprep.subr.bf16.mxu0 0
    %681 = vmatpush1.bf16.msra.mxu0 0
    %682 = vmatprep.subr.bf16.mxu0 0
    %683 = vmatpush1.bf16.msra.mxu0 0
    %684 = vmatprep.subr.bf16.mxu0 0
    %685 = vmatpush1.bf16.msra.mxu0 0
    %686 = vmatprep.subr.bf16.mxu0 0
    %687 = vmatpush1.bf16.msra.mxu0 0
    %688 = vmatprep.subr.bf16.mxu0 0
    %689 = vmatpush1.bf16.msra.mxu0 0
    %690 = vmatprep.subr.bf16.mxu0 0
    %691 = vmatpush1.bf16.msra.mxu0 0
    %692 = vmatprep.mubr.bf16.mxu0 0
    %693 = vmatmul.mubr.bf16.gmra.mrb[0].mxu0 %v522
    %v694 = vpop.f32.mrb[0].mxu0
    %v695 = vadd.f32 %v654, %v694
    %v696 = vpop.f32.mrb[0].mxu0
    %v697 = vadd.f32 %v656, %v696
    %v698 = vpop.f32.mrb[0].mxu0
    %v699 = vpop.f32.mrb[0].mxu0
    %700 = vdwg.mxu0
    %v701 = vmax.f32 %v613, 0.0
    %v702 = vmax.f32 %v615, 0.0
    %v703 = vmax.f32 %v695, 0.0
    %v704 = vmax.f32 %v697, 0.0
    %v705 = vpack.c.bf16 %v701, %v701
    %v706 = vpack.c.bf16 %v702, %v702
    %v707 = vpack.c.bf16 %v703, %v703
    %v708 = vpack.c.bf16 %v704, %v704
    %v709 = vld [vmem:[%s3] sm:$0xff]
    %v710 = vld [vmem:[%s3 + $0x8] sm:$0xff]
    %v711 = vld [vmem:[%s3 + $0x10] sm:$0xff]
    %v712 = vld [vmem:[%s3 + $0x18] sm:$0xff]
    %v713 = vld [vmem:[%s3 + $0x20] sm:$0xff]
    %v714 = vld [vmem:[%s3 + $0x28] sm:$0xff]
    %v715 = vld [vmem:[%s3 + $0x30] sm:$0xff]
    %v716 = vld [vmem:[%s3 + $0x38] sm:$0xff]
    %v717 = vld [vmem:[%s3 + $0x40] sm:$0xff]
    %v718 = vld [vmem:[%s3 + $0x48] sm:$0xff]
    %v719 = vld [vmem:[%s3 + $0x50] sm:$0xff]
    %v720 = vld [vmem:[%s3 + $0x58] sm:$0xff]
    %v721 = vld [vmem:[%s3 + $0x60] sm:$0xff]
    %v722 = vld [vmem:[%s3 + $0x68] sm:$0xff]
    %v723 = vld [vmem:[%s3 + $0x70] sm:$0xff]
    %v724 = vld [vmem:[%s3 + $0x78] sm:$0xff]
    %v725 = vld [vmem:[%s3 + $0x80] sm:$0xff]
    %v726 = vld [vmem:[%s3 + $0x88] sm:$0xff]
    %v727 = vld [vmem:[%s3 + $0x90] sm:$0xff]
    %v728 = vld [vmem:[%s3 + $0x98] sm:$0xff]
    %v729 = vld [vmem:[%s3 + $0xa0] sm:$0xff]
    %v730 = vld [vmem:[%s3 + $0xa8] sm:$0xff]
    %v731 = vld [vmem:[%s3 + $0xb0] sm:$0xff]
    %v732 = vld [vmem:[%s3 + $0xb8] sm:$0xff]
    %v733 = vld [vmem:[%s3 + $0xc0] sm:$0xff]
    %v734 = vld [vmem:[%s3 + $0xc8] sm:$0xff]
    %v735 = vld [vmem:[%s3 + $0xd0] sm:$0xff]
    %v736 = vld [vmem:[%s3 + $0xd8] sm:$0xff]
    %v737 = vld [vmem:[%s3 + $0xe0] sm:$0xff]
    %v738 = vld [vmem:[%s3 + $0xe8] sm:$0xff]
    %v739 = vld [vmem:[%s3 + $0xf0] sm:$0xff]
    %v740 = vld [vmem:[%s3 + $0xf8] sm:$0xff]
    %v741 = vld [vmem:[%s3 + $0x100] sm:$0xff]
    %v742 = vld [vmem:[%s3 + $0x108] sm:$0xff]
    %v743 = vld [vmem:[%s3 + $0x110] sm:$0xff]
    %v744 = vld [vmem:[%s3 + $0x118] sm:$0xff]
    %v745 = vld [vmem:[%s3 + $0x120] sm:$0xff]
    %v746 = vld [vmem:[%s3 + $0x128] sm:$0xff]
    %v747 = vld [vmem:[%s3 + $0x130] sm:$0xff]
    %v748 = vld [vmem:[%s3 + $0x138] sm:$0xff]
    %v749 = vld [vmem:[%s3 + $0x140] sm:$0xff]
    %v750 = vld [vmem:[%s3 + $0x148] sm:$0xff]
    %v751 = vld [vmem:[%s3 + $0x150] sm:$0xff]
    %v752 = vld [vmem:[%s3 + $0x158] sm:$0xff]
    %v753 = vld [vmem:[%s3 + $0x160] sm:$0xff]
    %v754 = vld [vmem:[%s3 + $0x168] sm:$0xff]
    %v755 = vld [vmem:[%s3 + $0x170] sm:$0xff]
    %v756 = vld [vmem:[%s3 + $0x178] sm:$0xff]
    %v757 = vld [vmem:[%s3 + $0x180] sm:$0xff]
    %v758 = vld [vmem:[%s3 + $0x188] sm:$0xff]
    %v759 = vld [vmem:[%s4] sm:$0x3]
    %v761 = vlaneseq
    %v762 = vshrl.u32 %v761, 7
    %v763 = vsub.s32 0, %v762
    %v764 = vrot.slane %v759, %v763
    %v765 = vlaneseq
    %v766 = vshrl.u32 %v765, 7
    %v767 = vsub.s32 1, %v766
    %v768 = vrot.slane %v759, %v767
    %v821 = vunpack.c.l.b16 %v709
    %v822 = vunpack.c.h.b16 %v709
    %v823 = vunpack.c.l.b16 %v710
    %v824 = vunpack.c.h.b16 %v710
    %v825 = vunpack.c.l.b16 %v711
    %v826 = vunpack.c.h.b16 %v711
    %v827 = vunpack.c.l.b16 %v712
    %v828 = vunpack.c.h.b16 %v712
    %v829 = vunpack.c.l.b16 %v713
    %v830 = vunpack.c.h.b16 %v713
    %v831 = vunpack.c.l.b16 %v714
    %v832 = vunpack.c.h.b16 %v714
    %v833 = vunpack.c.l.b16 %v715
    %v834 = vunpack.c.h.b16 %v715
    %v835 = vunpack.c.l.b16 %v716
    %v836 = vunpack.c.h.b16 %v716
    %v837 = vunpack.c.l.b16 %v717
    %v838 = vunpack.c.h.b16 %v717
    %v839 = vunpack.c.l.b16 %v718
    %v840 = vunpack.c.h.b16 %v718
    %v841 = vunpack.c.l.b16 %v719
    %v842 = vunpack.c.h.b16 %v719
    %v843 = vunpack.c.l.b16 %v720
    %v844 = vunpack.c.h.b16 %v720
    %v845 = vunpack.c.l.b16 %v721
    %v846 = vunpack.c.h.b16 %v721
    %v847 = vunpack.c.l.b16 %v722
    %v848 = vunpack.c.h.b16 %v722
    %v849 = vunpack.c.l.b16 %v723
    %v850 = vunpack.c.h.b16 %v723
    %v851 = vunpack.c.l.b16 %v724
    %v852 = vunpack.c.h.b16 %v724
    %v853 = vunpack.c.l.b16 %v725
    %v854 = vunpack.c.h.b16 %v725
    %v855 = vunpack.c.l.b16 %v726
    %v856 = vunpack.c.h.b16 %v726
    %v857 = vunpack.c.l.b16 %v727
    %v858 = vunpack.c.h.b16 %v727
    %v859 = vunpack.c.l.b16 %v728
    %v860 = vunpack.c.h.b16 %v728
    %v861 = vunpack.c.l.b16 %v729
    %v862 = vunpack.c.h.b16 %v729
    %v863 = vunpack.c.l.b16 %v730
    %v864 = vunpack.c.h.b16 %v730
    %v865 = vunpack.c.l.b16 %v731
    %v866 = vunpack.c.h.b16 %v731
    %v867 = vunpack.c.l.b16 %v732
    %v868 = vunpack.c.h.b16 %v732
    %v869 = vunpack.c.l.b16 %v733
    %v870 = vunpack.c.h.b16 %v733
    %v871 = vunpack.c.l.b16 %v734
    %v872 = vunpack.c.h.b16 %v734
    %v873 = vunpack.c.l.b16 %v735
    %v874 = vunpack.c.h.b16 %v735
    %v875 = vunpack.c.l.b16 %v736
    %v876 = vunpack.c.h.b16 %v736
    %v877 = vunpack.c.l.b16 %v737
    %v878 = vunpack.c.h.b16 %v737
    %v879 = vunpack.c.l.b16 %v738
    %v880 = vunpack.c.h.b16 %v738
    %v881 = vunpack.c.l.b16 %v739
    %v882 = vunpack.c.h.b16 %v739
    %v883 = vunpack.c.l.b16 %v740
    %v884 = vunpack.c.h.b16 %v740
    %v885 = vunpack.c.l.b16 %v741
    %v886 = vunpack.c.h.b16 %v741
    %v887 = vunpack.c.l.b16 %v742
    %v888 = vunpack.c.h.b16 %v742
    %v889 = vunpack.c.l.b16 %v743
    %v890 = vunpack.c.h.b16 %v743
    %v891 = vunpack.c.l.b16 %v744
    %v892 = vunpack.c.h.b16 %v744
    %v893 = vunpack.c.l.b16 %v745
    %v894 = vunpack.c.h.b16 %v745
    %v895 = vunpack.c.l.b16 %v746
    %v896 = vunpack.c.h.b16 %v746
    %v897 = vunpack.c.l.b16 %v747
    %v898 = vunpack.c.h.b16 %v747
    %v899 = vunpack.c.l.b16 %v748
    %v900 = vunpack.c.h.b16 %v748
    %v901 = vunpack.c.l.b16 %v749
    %v902 = vunpack.c.h.b16 %v749
    %v903 = vunpack.c.l.b16 %v750
    %v904 = vunpack.c.h.b16 %v750
    %v905 = vunpack.c.l.b16 %v751
    %v906 = vunpack.c.h.b16 %v751
    %v907 = vunpack.c.l.b16 %v752
    %v908 = vunpack.c.h.b16 %v752
    %v909 = vunpack.c.l.b16 %v753
    %v910 = vunpack.c.h.b16 %v753
    %v911 = vunpack.c.l.b16 %v754
    %v912 = vunpack.c.h.b16 %v754
    %v913 = vunpack.c.l.b16 %v755
    %v914 = vunpack.c.h.b16 %v755
    %v915 = vunpack.c.l.b16 %v756
    %v916 = vunpack.c.h.b16 %v756
    %v917 = vunpack.c.l.b16 %v757
    %v918 = vunpack.c.h.b16 %v757
    %v919 = vunpack.c.l.b16 %v758
    %v920 = vunpack.c.h.b16 %v758
    %v921 = vpack.c.b16 %v823, %v821
    %v922 = vpack.c.b16 %v824, %v822
    %v923 = vpack.c.b16 %v827, %v825
    %v924 = vpack.c.b16 %v828, %v826
    %v925 = vpack.c.b16 %v831, %v829
    %v926 = vpack.c.b16 %v832, %v830
    %v927 = vpack.c.b16 %v835, %v833
    %v928 = vpack.c.b16 %v836, %v834
    %v929 = vpack.c.b16 %v839, %v837
    %v930 = vpack.c.b16 %v840, %v838
    %v931 = vpack.c.b16 %v843, %v841
    %v932 = vpack.c.b16 %v844, %v842
    %v933 = vpack.c.b16 %v847, %v845
    %v934 = vpack.c.b16 %v848, %v846
    %v935 = vpack.c.b16 %v851, %v849
    %v936 = vpack.c.b16 %v852, %v850
    %v937 = vpack.c.b16 %v855, %v853
    %v938 = vpack.c.b16 %v856, %v854
    %v939 = vpack.c.b16 %v859, %v857
    %v940 = vpack.c.b16 %v860, %v858
    %v941 = vpack.c.b16 %v863, %v861
    %v942 = vpack.c.b16 %v864, %v862
    %v943 = vpack.c.b16 %v867, %v865
    %v944 = vpack.c.b16 %v868, %v866
    %v945 = vpack.c.b16 %v871, %v869
    %v946 = vpack.c.b16 %v872, %v870
    %v947 = vpack.c.b16 %v875, %v873
    %v948 = vpack.c.b16 %v876, %v874
    %v949 = vpack.c.b16 %v879, %v877
    %v950 = vpack.c.b16 %v880, %v878
    %v951 = vpack.c.b16 %v883, %v881
    %v952 = vpack.c.b16 %v884, %v882
    %v953 = vpack.c.b16 %v887, %v885
    %v954 = vpack.c.b16 %v888, %v886
    %v955 = vpack.c.b16 %v891, %v889
    %v956 = vpack.c.b16 %v892, %v890
    %v957 = vpack.c.b16 %v895, %v893
    %v958 = vpack.c.b16 %v896, %v894
    %v959 = vpack.c.b16 %v899, %v897
    %v960 = vpack.c.b16 %v900, %v898
    %v961 = vpack.c.b16 %v903, %v901
    %v962 = vpack.c.b16 %v904, %v902
    %v963 = vpack.c.b16 %v907, %v905
    %v964 = vpack.c.b16 %v908, %v906
    %v965 = vpack.c.b16 %v911, %v909
    %v966 = vpack.c.b16 %v912, %v910
    %v967 = vpack.c.b16 %v915, %v913
    %v968 = vpack.c.b16 %v916, %v914
    %v969 = vpack.c.b16 %v919, %v917
    %v970 = vpack.c.b16 %v920, %v918
    %vm1021 = vcmask 130048
    %v1023 = vsel %vm1021, %v708, 0
    %1025 = vmatprep.subr.bf16.mxu0 %v922
    %1026 = vmatpush1.bf16.msra.mxu0 %v921
    %1027 = vmatprep.subr.bf16.mxu0 %v924
    %1028 = vmatpush1.bf16.msra.mxu0 %v923
    %1029 = vmatprep.subr.bf16.mxu0 %v926
    %1030 = vmatpush1.bf16.msra.mxu0 %v925
    %1031 = vmatprep.subr.bf16.mxu0 %v928
    %1032 = vmatpush1.bf16.msra.mxu0 %v927
    %1033 = vmatprep.subr.bf16.mxu0 %v930
    %1034 = vmatpush1.bf16.msra.mxu0 %v929
    %1035 = vmatprep.subr.bf16.mxu0 %v932
    %1036 = vmatpush1.bf16.msra.mxu0 %v931
    %1037 = vmatprep.subr.bf16.mxu0 %v934
    %1038 = vmatpush1.bf16.msra.mxu0 %v933
    %1039 = vmatprep.subr.bf16.mxu0 %v936
    %1040 = vmatpush1.bf16.msra.mxu0 %v935
    %1041 = vmatprep.subr.bf16.mxu0 %v938
    %1042 = vmatpush1.bf16.msra.mxu0 %v937
    %1043 = vmatprep.subr.bf16.mxu0 %v940
    %1044 = vmatpush1.bf16.msra.mxu0 %v939
    %1045 = vmatprep.subr.bf16.mxu0 %v942
    %1046 = vmatpush1.bf16.msra.mxu0 %v941
    %1047 = vmatprep.subr.bf16.mxu0 %v944
    %1048 = vmatpush1.bf16.msra.mxu0 %v943
    %1049 = vmatprep.subr.bf16.mxu0 %v946
    %1050 = vmatpush1.bf16.msra.mxu0 %v945
    %1051 = vmatprep.subr.bf16.mxu0 %v948
    %1052 = vmatpush1.bf16.msra.mxu0 %v947
    %1053 = vmatprep.subr.bf16.mxu0 %v950
    %1054 = vmatpush1.bf16.msra.mxu0 %v949
    %1055 = vmatprep.subr.bf16.mxu0 %v952
    %1056 = vmatpush1.bf16.msra.mxu0 %v951
    %1057 = vmatprep.mubr.bf16.mxu0 %v706
    %1058 = vmatmul.mubr.bf16.gmra.mrb[0].mxu0 %v705
    %v1059 = vpop.f32.mrb[0].mxu0
    %v1060 = vadd.f32 %v764, %v1059
    %v1061 = vpop.f32.mrb[0].mxu0
    %v1062 = vadd.f32 %v768, %v1061
    %v1063 = vpop.f32.mrb[0].mxu0
    %v1064 = vpop.f32.mrb[0].mxu0
    %1065 = vdwg.mxu0
    %1066 = vmatprep.subr.bf16.mxu0 %v954
    %1067 = vmatpush1.bf16.msra.mxu0 %v953
    %1068 = vmatprep.subr.bf16.mxu0 %v956
    %1069 = vmatpush1.bf16.msra.mxu0 %v955
    %1070 = vmatprep.subr.bf16.mxu0 %v958
    %1071 = vmatpush1.bf16.msra.mxu0 %v957
    %1072 = vmatprep.subr.bf16.mxu0 %v960
    %1073 = vmatpush1.bf16.msra.mxu0 %v959
    %1074 = vmatprep.subr.bf16.mxu0 %v962
    %1075 = vmatpush1.bf16.msra.mxu0 %v961
    %1076 = vmatprep.subr.bf16.mxu0 %v964
    %1077 = vmatpush1.bf16.msra.mxu0 %v963
    %1078 = vmatprep.subr.bf16.mxu0 %v966
    %1079 = vmatpush1.bf16.msra.mxu0 %v965
    %1080 = vmatprep.subr.bf16.mxu0 %v968
    %1081 = vmatpush1.bf16.msra.mxu0 %v967
    %1082 = vmatprep.subr.bf16.mxu0 %v970
    %1083 = vmatpush1.bf16.msra.mxu0 %v969
    %1084 = vmatprep.subr.bf16.mxu0 0
    %1085 = vmatpush1.bf16.msra.mxu0 0
    %1086 = vmatprep.subr.bf16.mxu0 0
    %1087 = vmatpush1.bf16.msra.mxu0 0
    %1088 = vmatprep.subr.bf16.mxu0 0
    %1089 = vmatpush1.bf16.msra.mxu0 0
    %1090 = vmatprep.subr.bf16.mxu0 0
    %1091 = vmatpush1.bf16.msra.mxu0 0
    %1092 = vmatprep.subr.bf16.mxu0 0
    %1093 = vmatpush1.bf16.msra.mxu0 0
    %1094 = vmatprep.subr.bf16.mxu0 0
    %1095 = vmatpush1.bf16.msra.mxu0 0
    %1096 = vmatprep.subr.bf16.mxu0 0
    %1097 = vmatpush1.bf16.msra.mxu0 0
    %1098 = vmatprep.mubr.bf16.mxu0 %v1023
    %1099 = vmatmul.mubr.bf16.gmra.mrb[0].mxu0 %v707
    %v1100 = vpop.f32.mrb[0].mxu0
    %v1101 = vadd.f32 %v1060, %v1100
    %v1102 = vpop.f32.mrb[0].mxu0
    %v1103 = vadd.f32 %v1062, %v1102
    %v1104 = vpop.f32.mrb[0].mxu0
    %v1105 = vpop.f32.mrb[0].mxu0
    %1106 = vdwg.mxu0
    %v1107 = vmax.f32 %v1101, 0.0
    %v1108 = vmax.f32 %v1103, 0.0
    %v1109 = vpack.c.bf16 %v1107, %v1107
    %v1110 = vpack.c.bf16 %v1108, %v1108
    %v1111 = vld [vmem:[%s5] sm:$0xf]
    %v1112 = vld [vmem:[%s5 + $0x4] sm:$0xf]
    %v1113 = vld [vmem:[%s5 + $0x8] sm:$0xf]
    %v1114 = vld [vmem:[%s5 + $0xc] sm:$0xf]
    %v1115 = vld [vmem:[%s5 + $0x10] sm:$0xf]
    %v1116 = vld [vmem:[%s5 + $0x14] sm:$0xf]
    %v1117 = vld [vmem:[%s5 + $0x18] sm:$0xf]
    %v1118 = vld [vmem:[%s5 + $0x1c] sm:$0xf]
    %v1119 = vld [vmem:[%s5 + $0x20] sm:$0xf]
    %v1120 = vld [vmem:[%s5 + $0x24] sm:$0xf]
    %v1121 = vld [vmem:[%s5 + $0x28] sm:$0xf]
    %v1122 = vld [vmem:[%s5 + $0x2c] sm:$0xf]
    %v1123 = vld [vmem:[%s5 + $0x30] sm:$0xf]
    %v1124 = vld [vmem:[%s5 + $0x34] sm:$0xf]
    %v1125 = vld [vmem:[%s5 + $0x38] sm:$0xf]
    %v1126 = vld [vmem:[%s5 + $0x3c] sm:$0xf]
    %v1127 = vld [vmem:[%s5 + $0x40] sm:$0xf]
    %v1128 = vld [vmem:[%s5 + $0x44] sm:$0xf]
    %v1129 = vld [vmem:[%s5 + $0x48] sm:$0xf]
    %v1130 = vld [vmem:[%s5 + $0x4c] sm:$0xf]
    %v1131 = vld [vmem:[%s5 + $0x50] sm:$0xf]
    %v1132 = vld [vmem:[%s5 + $0x54] sm:$0xf]
    %v1133 = vld [vmem:[%s5 + $0x58] sm:$0xf]
    %v1134 = vld [vmem:[%s5 + $0x5c] sm:$0xf]
    %v1135 = vld [vmem:[%s5 + $0x60] sm:$0xf]
    %v1136 = vld [vmem:[%s6] sm:$0x1]
    %v1138 = vlaneseq
    %v1139 = vshrl.u32 %v1138, 7
    %v1140 = vsub.s32 0, %v1139
    %v1141 = vrot.slane %v1136, %v1140
    %v1168 = vunpack.c.l.b16 %v1111
    %v1169 = vunpack.c.l.b16 %v1112
    %v1170 = vunpack.c.l.b16 %v1113
    %v1171 = vunpack.c.l.b16 %v1114
    %v1172 = vunpack.c.l.b16 %v1115
    %v1173 = vunpack.c.l.b16 %v1116
    %v1174 = vunpack.c.l.b16 %v1117
    %v1175 = vunpack.c.l.b16 %v1118
    %v1176 = vunpack.c.l.b16 %v1119
    %v1177 = vunpack.c.l.b16 %v1120
    %v1178 = vunpack.c.l.b16 %v1121
    %v1179 = vunpack.c.l.b16 %v1122
    %v1180 = vunpack.c.l.b16 %v1123
    %v1181 = vunpack.c.l.b16 %v1124
    %v1182 = vunpack.c.l.b16 %v1125
    %v1183 = vunpack.c.l.b16 %v1126
    %v1184 = vunpack.c.l.b16 %v1127
    %v1185 = vunpack.c.l.b16 %v1128
    %v1186 = vunpack.c.l.b16 %v1129
    %v1187 = vunpack.c.l.b16 %v1130
    %v1188 = vunpack.c.l.b16 %v1131
    %v1189 = vunpack.c.l.b16 %v1132
    %v1190 = vunpack.c.l.b16 %v1133
    %v1191 = vunpack.c.l.b16 %v1134
    %v1192 = vunpack.c.l.b16 %v1135
    %v1193 = vpack.c.b16 %v1169, %v1168
    %v1194 = vpack.c.b16 %v1171, %v1170
    %v1195 = vpack.c.b16 %v1173, %v1172
    %v1196 = vpack.c.b16 %v1175, %v1174
    %v1197 = vpack.c.b16 %v1177, %v1176
    %v1198 = vpack.c.b16 %v1179, %v1178
    %v1199 = vpack.c.b16 %v1181, %v1180
    %v1200 = vpack.c.b16 %v1183, %v1182
    %v1201 = vpack.c.b16 %v1185, %v1184
    %v1202 = vpack.c.b16 %v1187, %v1186
    %v1203 = vpack.c.b16 %v1189, %v1188
    %v1204 = vpack.c.b16 %v1191, %v1190
    %v1205 = vpack.c.b16 %v1192, %v1192
    %vm1218 = vcmask 588800
    %v1220 = vsel %vm1218, %v1110, 0
    %vm1222 = vcmask 1043456
    %v1224 = vsel %vm1222, %v1205, 0
    %1226 = vmatprep.subr.bf16.mxu0 0
    %1227 = vmatpush1.bf16.msra.mxu0 %v1193
    %1228 = vmatprep.subr.bf16.mxu0 0
    %1229 = vmatpush1.bf16.msra.mxu0 %v1194
    %1230 = vmatprep.subr.bf16.mxu0 0
    %1231 = vmatpush1.bf16.msra.mxu0 %v1195
    %1232 = vmatprep.subr.bf16.mxu0 0
    %1233 = vmatpush1.bf16.msra.mxu0 %v1196
    %1234 = vmatprep.subr.bf16.mxu0 0
    %1235 = vmatpush1.bf16.msra.mxu0 %v1197
    %1236 = vmatprep.subr.bf16.mxu0 0
    %1237 = vmatpush1.bf16.msra.mxu0 %v1198
    %1238 = vmatprep.subr.bf16.mxu0 0
    %1239 = vmatpush1.bf16.msra.mxu0 %v1199
    %1240 = vmatprep.subr.bf16.mxu0 0
    %1241 = vmatpush1.bf16.msra.mxu0 %v1200
    %1242 = vmatprep.subr.bf16.mxu0 0
    %1243 = vmatpush1.bf16.msra.mxu0 %v1201
    %1244 = vmatprep.subr.bf16.mxu0 0
    %1245 = vmatpush1.bf16.msra.mxu0 %v1202
    %1246 = vmatprep.subr.bf16.mxu0 0
    %1247 = vmatpush1.bf16.msra.mxu0 %v1203
    %1248 = vmatprep.subr.bf16.mxu0 0
    %1249 = vmatpush1.bf16.msra.mxu0 %v1204
    %1250 = vmatprep.subr.bf16.mxu0 0
    %1251 = vmatpush1.bf16.msra.mxu0 %v1224
    %1252 = vmatprep.subr.bf16.mxu0 0
    %1253 = vmatpush1.bf16.msra.mxu0 0
    %1254 = vmatprep.subr.bf16.mxu0 0
    %1255 = vmatpush1.bf16.msra.mxu0 0
    %1256 = vmatprep.subr.bf16.mxu0 0
    %1257 = vmatpush1.bf16.msra.mxu0 0
    %1258 = vmatprep.mubr.bf16.mxu0 %v1220
    %1259 = vmatmul.mubr.bf16.gmra.mrb[0].mxu0 %v1109
    %v1260 = vpop.f32.mrb[0].mxu0
    %v1261 = vadd.f32 %v1141, %v1260
    %v1262 = vpop.f32.mrb[0].mxu0
    %v1263 = vpop.f32.mrb[0].mxu0
    %v1264 = vpop.f32.mrb[0].mxu0
    %1265 = vdwg.mxu0
    %v1266 = vmax.f32 %v1261, 0.0
    %v1267 = vpack.c.bf16 %v1266, %v1266
    %v1268 = vld [vmem:[%s7] sm:$0xf]
    %v1269 = vld [vmem:[%s7 + $0x4] sm:$0xf]
    %v1270 = vld [vmem:[%s7 + $0x8] sm:$0xf]
    %v1271 = vld [vmem:[%s7 + $0xc] sm:$0xf]
    %v1272 = vld [vmem:[%s7 + $0x10] sm:$0xf]
    %v1273 = vld [vmem:[%s7 + $0x14] sm:$0xf]
    %v1274 = vld [vmem:[%s7 + $0x18] sm:$0xf]
    %v1275 = vld [vmem:[%s7 + $0x1c] sm:$0xf]
    %v1276 = vld [vmem:[%s7 + $0x20] sm:$0xf]
    %v1277 = vld [vmem:[%s7 + $0x24] sm:$0xf]
    %v1278 = vld [vmem:[%s7 + $0x28] sm:$0xf]
    %v1279 = vld [vmem:[%s7 + $0x2c] sm:$0xf]
    %v1280 = vld [vmem:[%s7 + $0x30] sm:$0x3]
    %v1281 = vld [vmem:[%s8] sm:$0x1]
    %v1283 = vlaneseq
    %v1284 = vshrl.u32 %v1283, 7
    %v1285 = vsub.s32 0, %v1284
    %v1286 = vrot.slane %v1281, %v1285
    %v1301 = vunpack.c.l.b16 %v1268
    %v1302 = vunpack.c.l.b16 %v1269
    %v1303 = vunpack.c.l.b16 %v1270
    %v1304 = vunpack.c.l.b16 %v1271
    %v1305 = vunpack.c.l.b16 %v1272
    %v1306 = vunpack.c.l.b16 %v1273
    %v1307 = vunpack.c.l.b16 %v1274
    %v1308 = vunpack.c.l.b16 %v1275
    %v1309 = vunpack.c.l.b16 %v1276
    %v1310 = vunpack.c.l.b16 %v1277
    %v1311 = vunpack.c.l.b16 %v1278
    %v1312 = vunpack.c.l.b16 %v1279
    %v1313 = vunpack.c.l.b16 %v1280
    %v1314 = vpack.c.b16 %v1302, %v1301
    %v1315 = vpack.c.b16 %v1304, %v1303
    %v1316 = vpack.c.b16 %v1306, %v1305
    %v1317 = vpack.c.b16 %v1308, %v1307
    %v1318 = vpack.c.b16 %v1310, %v1309
    %v1319 = vpack.c.b16 %v1312, %v1311
    %v1320 = vpack.c.b16 %v1313, %v1313
    %vm1327 = vcmask 818176
    %v1329 = vsel %vm1327, %v1267, 0
    %vm1331 = vcmask 1041408
    %v1333 = vsel %vm1331, %v1320, 0
    %1335 = vmatprep.subr.bf16.mxu0 0
    %1336 = vmatpush1.bf16.msra.mxu0 %v1314
    %1337 = vmatprep.subr.bf16.mxu0 0
    %1338 = vmatpush1.bf16.msra.mxu0 %v1315
    %1339 = vmatprep.subr.bf16.mxu0 0
    %1340 = vmatpush1.bf16.msra.mxu0 %v1316
    %1341 = vmatprep.subr.bf16.mxu0 0
    %1342 = vmatpush1.bf16.msra.mxu0 %v1317
    %1343 = vmatprep.subr.bf16.mxu0 0
    %1344 = vmatpush1.bf16.msra.mxu0 %v1318
    %1345 = vmatprep.subr.bf16.mxu0 0
    %1346 = vmatpush1.bf16.msra.mxu0 %v1319
    %1347 = vmatprep.subr.bf16.mxu0 0
    %1348 = vmatpush1.bf16.msra.mxu0 %v1333
    %1349 = vmatprep.subr.bf16.mxu0 0
    %1350 = vmatpush1.bf16.msra.mxu0 0
    %1351 = vmatprep.subr.bf16.mxu0 0
    %1352 = vmatpush1.bf16.msra.mxu0 0
    %1353 = vmatprep.subr.bf16.mxu0 0
    %1354 = vmatpush1.bf16.msra.mxu0 0
    %1355 = vmatprep.subr.bf16.mxu0 0
    %1356 = vmatpush1.bf16.msra.mxu0 0
    %1357 = vmatprep.subr.bf16.mxu0 0
    %1358 = vmatpush1.bf16.msra.mxu0 0
    %1359 = vmatprep.subr.bf16.mxu0 0
    %1360 = vmatpush1.bf16.msra.mxu0 0
    %1361 = vmatprep.subr.bf16.mxu0 0
    %1362 = vmatpush1.bf16.msra.mxu0 0
    %1363 = vmatprep.subr.bf16.mxu0 0
    %1364 = vmatpush1.bf16.msra.mxu0 0
    %1365 = vmatprep.subr.bf16.mxu0 0
    %1366 = vmatpush1.bf16.msra.mxu0 0
    %1367 = vmatprep.mubr.bf16.mxu0 0
    %1368 = vmatmul.mubr.bf16.gmra.mrb[0].mxu0 %v1329
    %v1369 = vpop.f32.mrb[0].mxu0
    %v1370 = vadd.f32 %v1286, %v1369
    %v1371 = vpop.f32.mrb[0].mxu0
    %v1372 = vpop.f32.mrb[0].mxu0
    %v1373 = vpop.f32.mrb[0].mxu0
    %1374 = vdwg.mxu0
    %v1375 = vmax.f32 %v1370, 0.0
    %v1376 = vpack.c.bf16 %v1375, %v1375
    %v1377 = vld [vmem:[%s9] sm:$0xf]
    %v1378 = vld [vmem:[%s9 + $0x4] sm:$0x1]
    %v1379 = vld [vmem:[%s10] sm:$0x1]
    %v1381 = vlaneseq
    %v1382 = vshrl.u32 %v1381, 7
    %v1383 = vsub.s32 0, %v1382
    %v1384 = vrot.slane %v1379, %v1383
    %v1388 = vunpack.c.l.b16 %v1377
    %v1389 = vunpack.c.l.b16 %v1378
    %v1390 = vpack.c.b16 %v1389, %v1388
    %vm1391 = vcmask 80896
    %v1393 = vsel %vm1391, %v1376, 0
    %vm1395 = vcmask 1044480
    %v1397 = vsel %vm1395, %v1390, 0
    %1399 = vmatprep.subr.bf16.mxu0 0
    %1400 = vmatpush1.bf16.msra.mxu0 %v1397
    %1401 = vmatprep.subr.bf16.mxu0 0
    %1402 = vmatpush1.bf16.msra.mxu0 0
    %1403 = vmatprep.subr.bf16.mxu0 0
    %1404 = vmatpush1.bf16.msra.mxu0 0
    %1405 = vmatprep.subr.bf16.mxu0 0
    %1406 = vmatpush1.bf16.msra.mxu0 0
    %1407 = vmatprep.subr.bf16.mxu0 0
    %1408 = vmatpush1.bf16.msra.mxu0 0
    %1409 = vmatprep.subr.bf16.mxu0 0
    %1410 = vmatpush1.bf16.msra.mxu0 0
    %1411 = vmatprep.subr.bf16.mxu0 0
    %1412 = vmatpush1.bf16.msra.mxu0 0
    %1413 = vmatprep.subr.bf16.mxu0 0
    %1414 = vmatpush1.bf16.msra.mxu0 0
    %1415 = vmatprep.subr.bf16.mxu0 0
    %1416 = vmatpush1.bf16.msra.mxu0 0
    %1417 = vmatprep.subr.bf16.mxu0 0
    %1418 = vmatpush1.bf16.msra.mxu0 0
    %1419 = vmatprep.subr.bf16.mxu0 0
    %1420 = vmatpush1.bf16.msra.mxu0 0
    %1421 = vmatprep.subr.bf16.mxu0 0
    %1422 = vmatpush1.bf16.msra.mxu0 0
    %1423 = vmatprep.subr.bf16.mxu0 0
    %1424 = vmatpush1.bf16.msra.mxu0 0
    %1425 = vmatprep.subr.bf16.mxu0 0
    %1426 = vmatpush1.bf16.msra.mxu0 0
    %1427 = vmatprep.subr.bf16.mxu0 0
    %1428 = vmatpush1.bf16.msra.mxu0 0
    %1429 = vmatprep.subr.bf16.mxu0 0
    %1430 = vmatpush1.bf16.msra.mxu0 0
    %1431 = vmatprep.mubr.bf16.mxu0 0
    %1432 = vmatmul.mubr.bf16.gmra.mrb[0].mxu0 %v1393
    %v1433 = vpop.f32.mrb[0].mxu0
    %v1434 = vadd.f32 %v1384, %v1433
    %v1435 = vpop.f32.mrb[0].mxu0
    %v1436 = vpop.f32.mrb[0].mxu0
    %v1437 = vpop.f32.mrb[0].mxu0
    %1438 = vdwg.mxu0
    %v1439 = vlaneseq
    %v1440 = vand.u32 %v1439, 127
    %vm1441 = vcmp.ge.s32.totalorder %v1440, 1
    %vm1442 = vcmp.lt.s32.totalorder %v1440, 4
    %vm1443 = vmand %vm1441, %vm1442
    %v1444 = vsel %vm1443, %v1434, -inf
    %1445 = vmax.xlane.f32.xlu0 %v1444
    %v1446 = vpop.xlane.xlu0 %1445
    %vm1447 = vcmp.eq.s32.totalorder %v1440, 0
    %v1448 = vsub.f32 0.0, %v1434
    %v1449 = vsub.f32 %v1444, %v1446
    %v1450 = vsel %vm1447, %v1448, %v1449
    %v1451 = vmul.f32 %v1450, 1.442695
    %v1452 = vpow.pop %v1451
    %v1453 = vadd.f32 %v1452, 1.0
    %v1454 = vrcp.pop %v1453
    %v1455 = vmul.f32 1.0, %v1454
    %v1456 = vsel %vm1443, %v1452, 0.0
    %1457 = vadd.xlane.f32.xlu0 %v1456
    %v1458 = vpop.xlane.xlu0 %1457
    %v1459 = vrcp.pop %v1458
    %v1460 = vmul.f32 %v1452, %v1459
    %v1461 = vsel %vm1443, %v1460, 0.0
    %v1462 = vsel %vm1447, %v1455, %v1461
    %1463 = vst [vmem:[#allocation2] sm:$0xff] %v1462
    // Predicated region
    $region46: #{tpu_custom_call.1} parent=1 // pred_check
      _
    $region47: #{tpu_custom_call.1} parent=1 // pred_check_branch
      %1465 = sbr.rel (0) target = $region49
    $region48: #{tpu_custom_call.1} parent=1 // pred_region
      %s1467 = ssub.s32 128, 128
      %1468 = vsyncadd [#allocation3], %s1467
      %s1470 = sshll.u32 [#allocation2], 4
      %s1471 = int_to_ptr.vmem [resolvable:$true] %s1470
      %1473 = dma.vmem_to_hbm [thread:$0]  %s1471, 128, %s11, [#allocation3]
    $region49: #{tpu_custom_call.1} parent=1 // pred_fallthru
      _
    // Predicated region
    $region50: #{tpu_custom_call.1} parent=1 // pred_check
      _
    $region51: #{tpu_custom_call.1} parent=1 // pred_check_branch
      %1475 = sbr.rel (0) target = $region53
    $region52: #{tpu_custom_call.1} parent=1 // pred_region
      %1476 = dma.done [#allocation3], 128
    $region53: #{tpu_custom_call.1} parent=1 // pred_fallthru
      _
    %1477 = vsyncpa [#allocation3], 1

</llo_original>
